<compile_context>
chip_gen: v7x
topology: tpu7x:2x2x1
jax: 0.10.0
libtpu: 0.0.40
codegen_flags: <defaults>
</compile_context>

<pallas_src>
import math

import jax
import jax.numpy as jnp
from jax.experimental import pallas as pl
from jax.experimental.pallas import tpu as pltpu

# Model hyperparameters (synthetic, small but tile-friendly).
N_EMBDS = 32       # K
VOCAB_SIZE = 128   # N


def _linear_kernel(x_ref, w_ref, b_ref, o_ref):
    """x_ref: (tm, tk), w_ref: (tk, tn)  -- any float dtype, cast to bf16 here.
    b_ref: (1, tn) f32.  o_ref: (tm, tn) f32, doubles as the accumulator
    (its block index is constant across the K grid axis, so it stays
    VMEM-resident for the whole reduction)."""
    k = pl.program_id(2)

    @pl.when(k == 0)
    def _():
        o_ref[...] = jnp.zeros_like(o_ref)

    # In-kernel bf16 cast (no-op if the operands are already bf16); f32
    # accumulation on the MXU into the resident f32 output tile.
    o_ref[...] += jnp.dot(
        x_ref[...].astype(jnp.bfloat16),
        w_ref[...].astype(jnp.bfloat16),
        preferred_element_type=jnp.float32,
    )

    @pl.when(k == pl.num_programs(2) - 1)
    def _():
        # f32 epilogue: bias broadcast over rows (tn is lane-dense).
        o_ref[...] += b_ref[...]


def _device_defaults():
    """Per-generation tile preferences + a VMEM cap for the scoped limit."""
    try:
        kind = jax.devices()[0].device_kind.lower()
    except Exception:  # pragma: no cover - e.g. no devices yet
        kind = ""
    mib = 1024 * 1024
    if "v7" in kind:
        # v7x: 64 MiB VMEM per TC -> tn=2048 keeps the double-buffered
        # footprint around 8-22 MiB depending on weight dtype.
        return dict(tm=256, tn=2048, tk=1024, vmem_cap=56 * mib)
    # v5e / v6e: 128 MiB VMEM -> wider output tile cuts X re-streaming and
    # grid-step overhead along N.
    return dict(tm=256, tn=4096, tk=1024, vmem_cap=112 * mib)


def _pick_m_or_n_tile(dim, pref):
    # Full extent is always legal; otherwise pref (multiple of 8 / 128) with
    # Pallas-padded edge blocks (safe: output stores are masked to the array).
    return dim if dim <= pref else pref


def _pick_k_tile(k_dim, pref):
    # K is a reduction: padded-K garbage would pollute valid outputs, so tk
    # must divide K.  tk is also the lane dim of the X block, so it must be a
    # multiple of 128 unless it equals full K.  Pick the largest
    # multiple-of-128 divisor of K <= pref; fall back to full K only if none.
    if k_dim <= pref:
        return k_dim
    t = (pref // 128) * 128
    while t >= 128:
        if k_dim % t == 0:
            return t
        t -= 128
    return k_dim


def _vmem_limit_bytes(tm, tn, tk, x_itemsize, w_itemsize, cap):
    """Double-buffered tile footprint + headroom, clamped to [32 MiB, cap]."""
    mib = 1024 * 1024
    dbuf = 2 * (
        tm * tk * x_itemsize      # X tile
        + tk * tn * w_itemsize    # W tile
        + tn * 4                  # bias tile
        + tm * tn * 4             # f32 output / accumulator tile
    )
    return int(min(cap, max(32 * mib, dbuf + 8 * mib)))


def final_proj(x, weight, bias, *, tm=None, tn=None, tk=None):
    """x: [B, S, K]; weight: [K, N]; bias: [N] -> [B, S, N] f32.

    x / weight may be f32 or bf16; they are cast to bf16 inside the kernel.
    Storing `weight` persistently as bf16 halves its HBM stream again."""
    B, S, K = x.shape
    N = weight.shape[1]
    M = B * S

    d = _device_defaults()
    tm = _pick_m_or_n_tile(M, d["tm"]) if tm is None else tm
    tn = _pick_m_or_n_tile(N, d["tn"]) if tn is None else tn
    tk = _pick_k_tile(K, d["tk"]) if tk is None else tk
    assert tm == M or tm % 8 == 0, "tm must be a multiple of 8 (or full M)"
    assert tn == N or tn % 128 == 0, "tn must be a multiple of 128 (or full N)"
    assert tk == K or (K % tk == 0 and tk % 128 == 0), \
        "tk must divide K and be a multiple of 128 (or equal K)"

    # No dtype conversion in the wrapper: pass operands through as stored.
    x2d = x.reshape(M, K)
    b2d = bias.reshape(1, N).astype(jnp.float32)

    # Grid: N-tiles (outer), M-tiles, K-tiles (innermost reduction).  The W
    # block index (k, j) is independent of i, so when K fits in one tk tile
    # the huge vocab weight matrix is streamed from HBM exactly once while
    # the much smaller X is re-read N/tn times.
    grid_n, grid_m, grid_k = pl.cdiv(N, tn), pl.cdiv(M, tm), pl.cdiv(K, tk)
    grid = (grid_n, grid_m, grid_k)

    x_isz = jnp.dtype(x2d.dtype).itemsize
    w_isz = jnp.dtype(weight.dtype).itemsize
    w_reads = 1 if grid_k == 1 else grid_m   # W re-fetched per M tile only if K is multi-tile
    cost = pl.CostEstimate(
        flops=2 * M * K * N,
        transcendentals=0,
        bytes_accessed=(M * K * x_isz * grid_n      # X re-read per N tile
                        + K * N * w_isz * w_reads   # W stream
                        + N * 4 * grid_n * grid_m   # bias (tiny)
                        + M * N * 4),               # output writeback
    )

    out = pl.pallas_call(
        _linear_kernel,
        out_shape=jax.ShapeDtypeStruct((M, N), jnp.float32),
        grid_spec=pltpu.PrefetchScalarGridSpec(
            num_scalar_prefetch=0,
            grid=grid,
            in_specs=[
                pl.BlockSpec((tm, tk), lambda j, i, k: (i, k)),  # X row tile
                pl.BlockSpec((tk, tn), lambda j, i, k: (k, j)),  # W col tile
                pl.BlockSpec((1, tn), lambda j, i, k: (0, j)),   # bias tile
            ],
            out_specs=pl.BlockSpec((tm, tn), lambda j, i, k: (i, j)),
        ),
        compiler_params=pltpu.CompilerParams(
            dimension_semantics=("parallel", "parallel", "arbitrary"),
            vmem_limit_bytes=_vmem_limit_bytes(tm, tn, tk, x_isz, w_isz,
                                               d["vmem_cap"]),
        ),
        cost_estimate=cost,
    )(x2d, weight, b2d)

    return out.reshape(B, S, N)


def init_params(key, n_embds, vocab_size):
    """Deterministic init mirroring PyTorch nn.Linear defaults
    (uniform(-1/sqrt(in_features), 1/sqrt(in_features)))."""
    kw, kb = jax.random.split(key)
    bound = 1.0 / math.sqrt(n_embds)
    # Stored already transposed: [in, out] so the kernel does X @ W directly.
    weight = jax.random.uniform(
        kw, (n_embds, vocab_size), jnp.float32, minval=-bound, maxval=bound
    )
    bias = jax.random.uniform(
        kb, (vocab_size,), jnp.float32, minval=-bound, maxval=bound
    )
    return weight, bias


if __name__ == "__main__":
    key = jax.random.PRNGKey(0)
    k_x, k_p, k_x2, k_p2 = jax.random.split(key, 4)

    # --- Test 1: module-sized shapes (single-tile grid), f32 params. ---
    batch, seq = 2, 8
    x = jax.random.normal(k_x, (batch, seq, N_EMBDS), jnp.float32)
    weight, bias = init_params(k_p, N_EMBDS, VOCAB_SIZE)

    out = final_proj(x, weight, bias)
    out = jax.block_until_ready(out)
    assert out.shape == (batch, seq, VOCAB_SIZE)

    # Tight check vs. reference with the same bf16 operand rounding.
    x_bf = x.astype(jnp.bfloat16).astype(jnp.float32)
    w_bf = weight.astype(jnp.bfloat16).astype(jnp.float32)
    ref_bf16 = x_bf @ w_bf + bias
    assert jnp.allclose(out, ref_bf16, atol=1e-3, rtol=1e-3)
    # Loose check vs. the full-f32 module forward (bf16 quantization only).
    ref_f32 = x @ weight + bias
    assert jnp.allclose(out, ref_f32, atol=2e-2, rtol=2e-2)

    # --- Test 2: multi-tile M / N / K grid (exercises the K-reduction
    #     init/finalize, accumulator carry and edge masking), with the weight
    #     stored persistently as bf16 (the 2 B/elem HBM path). ---
    B2, S2, K2, N2 = 2, 256, 256, 384
    x2 = jax.random.normal(k_x2, (B2, S2, K2), jnp.float32)
    kw2, kb2 = jax.random.split(k_p2)
    bound2 = 1.0 / math.sqrt(K2)
    w2_f32 = jax.random.uniform(kw2, (K2, N2), jnp.float32,
                                minval=-bound2, maxval=bound2)
    b2 = jax.random.uniform(kb2, (N2,), jnp.float32,
                            minval=-bound2, maxval=bound2)
    w2_bf16 = w2_f32.astype(jnp.bfloat16)          # persistent bf16 storage

    out2 = final_proj(x2, w2_bf16, b2, tm=128, tn=128, tk=128)  # grid (3,4,2)
    out2 = jax.block_until_ready(out2)
    assert out2.shape == (B2, S2, N2)

    ref2 = (x2.astype(jnp.bfloat16).astype(jnp.float32)
            @ w2_bf16.astype(jnp.float32) + b2)
    assert jnp.allclose(out2, ref2, atol=1e-3, rtol=1e-3)
    ref2_f32 = x2 @ w2_f32 + b2
    assert jnp.allclose(out2, ref2_f32, atol=3e-2, rtol=3e-2)

    print("KERNEL_OK")
</pallas_src>

<mosaic_0001>
module attributes {stable_mosaic.version = 11 : i64} {
  func.func @_linear_kernel(%arg0: i32, %arg1: i32, %arg2: i32, %arg3: memref<16x32xf32, #tpu.memory_space<vmem>>, %arg4: memref<32x128xf32, #tpu.memory_space<vmem>>, %arg5: memref<1x128xf32, #tpu.memory_space<vmem>>, %arg6: memref<16x128xf32, #tpu.memory_space<vmem>>) attributes {dimension_semantics = [#tpu.dimension_semantics<parallel>, #tpu.dimension_semantics<parallel>, #tpu.dimension_semantics<arbitrary>], iteration_bounds = array<i64: 1, 1, 1>, scalar_prefetch = 0 : i64, scratch_operands = 0 : i64, tpu.core_type = #tpu.core_type<tc>, window_params = [{transform_indices = @transform_0, window_bounds = array<i64: 16, 32>}, {transform_indices = @transform_1, window_bounds = array<i64: 32, 128>}, {transform_indices = @transform_2, window_bounds = array<i64: 1, 128>}, {transform_indices = @transform_3, window_bounds = array<i64: 16, 128>}]} {
    %c0_i32 = arith.constant 0 : i32
    %0 = arith.cmpi eq, %arg2, %c0_i32 : i32
    %1 = arith.extui %0 : i1 to i32
    %c0_i32_0 = arith.constant 0 : i32
    %2 = arith.cmpi ne, %1, %c0_i32_0 : i32
    scf.if %2 {
      %cst_10 = arith.constant 0.000000e+00 : f32
      %14 = vector.broadcast %cst_10 : f32 to vector<16x128xf32>
      %c0_11 = arith.constant 0 : index
      %c0_12 = arith.constant 0 : index
      %15 = vector.load %arg6[%c0_11, %c0_12] : memref<16x128xf32, #tpu.memory_space<vmem>>, vector<16x128xf32>
      tpu.vector_store %arg6[%c0_11, %c0_12], %14 {strides = array<i32>} : memref<16x128xf32, #tpu.memory_space<vmem>>, vector<16x128xf32>,
    } else {
    }
    %c0 = arith.constant 0 : index
    %c0_1 = arith.constant 0 : index
    %3 = vector.load %arg6[%c0, %c0_1] : memref<16x128xf32, #tpu.memory_space<vmem>>, vector<16x128xf32>
    %c0_2 = arith.constant 0 : index
    %c0_3 = arith.constant 0 : index
    %4 = vector.load %arg3[%c0_2, %c0_3] : memref<16x32xf32, #tpu.memory_space<vmem>>, vector<16x32xf32>
    %5 = arith.truncf %4 : vector<16x32xf32> to vector<16x32xbf16>
    %c0_4 = arith.constant 0 : index
    %c0_5 = arith.constant 0 : index
    %6 = vector.load %arg4[%c0_4, %c0_5] : memref<32x128xf32, #tpu.memory_space<vmem>>, vector<32x128xf32>
    %7 = arith.truncf %6 : vector<32x128xf32> to vector<32x128xbf16>
    %cst = arith.constant dense<0.000000e+00> : vector<16x128xf32>
    %8 = tpu.matmul %5, %7, %cst {dimension_numbers = #tpu.dot_dimension_numbers<[1], [0], [0], [1], [0, 0, 1, 1], [], []>} : vector<16x32xbf16>, vector<32x128xbf16>, vector<16x128xf32> -> vector<16x128xf32>
    %9 = arith.addf %3, %8 : vector<16x128xf32>
    %c0_6 = arith.constant 0 : index
    %c0_7 = arith.constant 0 : index
    %10 = vector.load %arg6[%c0_6, %c0_7] : memref<16x128xf32, #tpu.memory_space<vmem>>, vector<16x128xf32>
    tpu.vector_store %arg6[%c0_6, %c0_7], %9 {strides = array<i32>} : memref<16x128xf32, #tpu.memory_space<vmem>>, vector<16x128xf32>,
    %c0_i32_8 = arith.constant 0 : i32
    %11 = arith.cmpi eq, %arg2, %c0_i32_8 : i32
    %12 = arith.extui %11 : i1 to i32
    %c0_i32_9 = arith.constant 0 : i32
    %13 = arith.cmpi ne, %12, %c0_i32_9 : i32
    scf.if %13 {
      %c0_10 = arith.constant 0 : index
      %c0_11 = arith.constant 0 : index
      %14 = vector.load %arg6[%c0_10, %c0_11] : memref<16x128xf32, #tpu.memory_space<vmem>>, vector<16x128xf32>
      %c0_12 = arith.constant 0 : index
      %c0_13 = arith.constant 0 : index
      %15 = vector.load %arg5[%c0_12, %c0_13] : memref<1x128xf32, #tpu.memory_space<vmem>>, vector<1x128xf32>
      %16 = vector.broadcast %15 : vector<1x128xf32> to vector<16x128xf32>
      %17 = arith.addf %14, %16 : vector<16x128xf32>
      %c0_14 = arith.constant 0 : index
      %c0_15 = arith.constant 0 : index
      %18 = vector.load %arg6[%c0_14, %c0_15] : memref<16x128xf32, #tpu.memory_space<vmem>>, vector<16x128xf32>
      tpu.vector_store %arg6[%c0_14, %c0_15], %17 {strides = array<i32>} : memref<16x128xf32, #tpu.memory_space<vmem>>, vector<16x128xf32>,
    } else {
    }
    return
  }
  func.func @transform_0(%arg0: i32, %arg1: i32, %arg2: i32) -> (i32, i32) {
    %c0_i32 = arith.constant 0 : i32
    return %arg1, %arg2 : i32, i32
  }
  func.func @transform_1(%arg0: i32, %arg1: i32, %arg2: i32) -> (i32, i32) {
    %c0_i32 = arith.constant 0 : i32
    return %arg2, %arg0 : i32, i32
  }
  func.func @transform_2(%arg0: i32, %arg1: i32, %arg2: i32) -> (i32, i32) {
    %c0_i32 = arith.constant 0 : i32
    %c0_i32_0 = arith.constant 0 : i32
    return %c0_i32, %arg0 : i32, i32
  }
  func.func @transform_3(%arg0: i32, %arg1: i32, %arg2: i32) -> (i32, i32) {
    %c0_i32 = arith.constant 0 : i32
    return %arg1, %arg0 : i32, i32
  }
}

</mosaic_0001>

<llo_original>
// kernel: tpu_custom_call.1
$region0: #{tpu_custom_call.1}
  #allocation0 [shape = 'u32[]', space=smem, size = 0x4, offset = 0x4, fixed_abs, tag = 'smem constant byte address 0x4 - core index']
  #allocation1 [shape = 'u32[144,128]{1,0:T(1,128)}', space=vmem, size = 0x12000, scoped, tag = 'internal scratch']
  %s0 = inlined_call_operand.hbm [shape: f32[16,32], index: 0, kind: input, shape index: {}]
  %s1 = inlined_call_operand.hbm [shape: f32[32,128], index: 1, kind: input, shape index: {}]
  %s2 = inlined_call_operand.vmem [shape: f32[1,128], index: 2, kind: input, shape index: {}]
  %s3 = inlined_call_operand.hbm [shape: f32[16,128], index: 3, kind: output, shape index: {}]
  %s4 = sld [smem:[#allocation0]]
  $region38: #{tpu_custom_call.1} parent=0
    _
  %s6 = ssub.s32 1, %s4
  %s7 = scalar_select 0, %s6, %s4
  $region1: #{tpu_custom_call.1} parent=0
    #allocation2 [shape = 'u8[8192]{0}', space=vmem, size = 0x2000, scoped, tag = 'input window, operand 0, single buffered']
    #allocation3 [shape = 's32[1]{0}', space=sflag, size = 0x4, scoped, tag = 'scoped memory for tpu_custom_call.1']
    #allocation4 [shape = 's32[1]{0}', space=sflag, size = 0x4, scoped, tag = 'scoped memory for tpu_custom_call.1']
    #allocation5 [shape = 'u8[16384]{0}', space=vmem, size = 0x4000, scoped, tag = 'input window, operand 1, single buffered']
    #allocation6 [shape = 's32[1]{0}', space=sflag, size = 0x4, scoped, tag = 'scoped memory for tpu_custom_call.1']
    #allocation7 [shape = 'u8[8192]{0}', space=vmem, size = 0x2000, scoped, tag = 'output window, operand 0, single buffered']
    %8 = vsyncpa [#allocation3], 0
    %9 = vsyncpa [#allocation6], 0
    %10 = vsyncpa [#allocation4], 0
    // Predicated region
    $region2: #{tpu_custom_call.1} parent=1 // pred_check
      _
    $region3: #{tpu_custom_call.1} parent=1 // pred_check_branch
      %12 = sbr.rel (0) target = $region5
    $region4: #{tpu_custom_call.1} parent=1 // pred_region
      %s14 = ssub.s32 256, 256
      %15 = vsyncadd [#allocation3], %s14
      %s16 = sshll.u32 [#allocation2], 4
      %s17 = int_to_ptr.vmem [resolvable:$true] %s16
      %22 = dma.hbm_to_vmem [thread:$0]  %s0, 256, %s17, [#allocation3], 128, 128, 8
    $region5: #{tpu_custom_call.1} parent=1 // pred_fallthru
      _
    // Predicated region
    $region6: #{tpu_custom_call.1} parent=1 // pred_check
      _
    $region7: #{tpu_custom_call.1} parent=1 // pred_check_branch
      %24 = sbr.rel (0) target = $region9
    $region8: #{tpu_custom_call.1} parent=1 // pred_region
      %s26 = ssub.s32 512, 512
      %27 = vsyncadd [#allocation6], %s26
      %s28 = sshll.u32 [#allocation5], 4
      %s29 = int_to_ptr.vmem [resolvable:$true] %s28
      %34 = dma.hbm_to_vmem [thread:$0]  %s1, 512, %s29, [#allocation6], 128, 128, 8
    $region9: #{tpu_custom_call.1} parent=1 // pred_fallthru
      _
    // Predicated region
    $region10: #{tpu_custom_call.1} parent=1 // pred_check
      _
    $region11: #{tpu_custom_call.1} parent=1 // pred_check_branch
      %36 = sbr.rel (0) target = $region13
    $region12: #{tpu_custom_call.1} parent=1 // pred_region
      _
    $region13: #{tpu_custom_call.1} parent=1 // pred_fallthru
      _
    // Predicated region
    $region14: #{tpu_custom_call.1} parent=1 // pred_check
      _
    $region15: #{tpu_custom_call.1} parent=1 // pred_check_branch
      %38 = sbr.rel (0) target = $region17
    $region16: #{tpu_custom_call.1} parent=1 // pred_region
      %39 = dma.done [#allocation3], 256
    $region17: #{tpu_custom_call.1} parent=1 // pred_fallthru
      _
    // Predicated region
    $region18: #{tpu_custom_call.1} parent=1 // pred_check
      _
    $region19: #{tpu_custom_call.1} parent=1 // pred_check_branch
      %41 = sbr.rel (0) target = $region21
    $region20: #{tpu_custom_call.1} parent=1 // pred_region
      %42 = dma.done [#allocation6], 512
    $region21: #{tpu_custom_call.1} parent=1 // pred_fallthru
      _
    %p44 = scmp.eq.s32.totalorder 0, 0
    // Predicated region
    $region22: #{tpu_custom_call.1} parent=1 // pred_check
      %p45 = pneg %p44
    $region23: #{tpu_custom_call.1} parent=1 // pred_check_branch
      %47 = sbr.rel (%p45) target = $region25
    $region24: #{tpu_custom_call.1} parent=1 // pred_region
      %48 = vst [vmem:[#allocation7] sm:$0xff] 0.0
      %49 = vst [vmem:[#allocation7 + $0x8] sm:$0xff] 0.0
    $region25: #{tpu_custom_call.1} parent=1 // pred_fallthru
      _
    %v50 = vld [vmem:[#allocation7] sm:$0xff]
    %v51 = vld [vmem:[#allocation7 + $0x8] sm:$0xff]
    %v52 = vld [vmem:[#allocation2] sm:$0xff]
    %v53 = vld [vmem:[#allocation2 + $0x8] sm:$0xff]
    %v54 = vpack.c.bf16 %v53, %v52
    %v55 = vld [vmem:[#allocation5] sm:$0xff]
    %v56 = vld [vmem:[#allocation5 + $0x8] sm:$0xff]
    %v57 = vld [vmem:[#allocation5 + $0x10] sm:$0xff]
    %v58 = vld [vmem:[#allocation5 + $0x18] sm:$0xff]
    %v59 = vpack.c.bf16 %v56, %v55
    %v60 = vpack.c.bf16 %v58, %v57
    %vm61 = vcmask 261120
    %v63 = vsel %vm61, %v54, 0
    %65 = vmatprep.subr.bf16.mxu0 0
    %66 = vmatpush1.bf16.msra.mxu0 %v59
    %67 = vmatprep.subr.bf16.mxu0 0
    %68 = vmatpush1.bf16.msra.mxu0 %v60
    %69 = vmatprep.subr.bf16.mxu0 0
    %70 = vmatpush1.bf16.msra.mxu0 0
    %71 = vmatprep.subr.bf16.mxu0 0
    %72 = vmatpush1.bf16.msra.mxu0 0
    %73 = vmatprep.subr.bf16.mxu0 0
    %74 = vmatpush1.bf16.msra.mxu0 0
    %75 = vmatprep.subr.bf16.mxu0 0
    %76 = vmatpush1.bf16.msra.mxu0 0
    %77 = vmatprep.subr.bf16.mxu0 0
    %78 = vmatpush1.bf16.msra.mxu0 0
    %79 = vmatprep.subr.bf16.mxu0 0
    %80 = vmatpush1.bf16.msra.mxu0 0
    %81 = vmatprep.subr.bf16.mxu0 0
    %82 = vmatpush1.bf16.msra.mxu0 0
    %83 = vmatprep.subr.bf16.mxu0 0
    %84 = vmatpush1.bf16.msra.mxu0 0
    %85 = vmatprep.subr.bf16.mxu0 0
    %86 = vmatpush1.bf16.msra.mxu0 0
    %87 = vmatprep.subr.bf16.mxu0 0
    %88 = vmatpush1.bf16.msra.mxu0 0
    %89 = vmatprep.subr.bf16.mxu0 0
    %90 = vmatpush1.bf16.msra.mxu0 0
    %91 = vmatprep.subr.bf16.mxu0 0
    %92 = vmatpush1.bf16.msra.mxu0 0
    %93 = vmatprep.subr.bf16.mxu0 0
    %94 = vmatpush1.bf16.msra.mxu0 0
    %95 = vmatprep.subr.bf16.mxu0 0
    %96 = vmatpush1.bf16.msra.mxu0 0
    %97 = vmatprep.mubr.bf16.mxu0 0
    %98 = vmatmul.mubr.bf16.gmra.mrb[0].mxu0 %v63
    %v99 = vpop.f32.mrb[0].mxu0
    %v100 = vadd.f32 0.0, %v99
    %v101 = vpop.f32.mrb[0].mxu0
    %v102 = vpop.f32.mrb[0].mxu0
    %v103 = vadd.f32 0.0, %v102
    %v104 = vpop.f32.mrb[0].mxu0
    %105 = vdwg.mxu0
    %v106 = vadd.f32 %v50, %v100
    %v107 = vadd.f32 %v51, %v103
    %108 = vst [vmem:[#allocation7] sm:$0xff] %v106
    %109 = vst [vmem:[#allocation7 + $0x8] sm:$0xff] %v107
    // Predicated region
    $region26: #{tpu_custom_call.1} parent=1 // pred_check
      %p110 = pneg %p44
    $region27: #{tpu_custom_call.1} parent=1 // pred_check_branch
      %112 = sbr.rel (%p110) target = $region29
    $region28: #{tpu_custom_call.1} parent=1 // pred_region
      %v113 = vld [vmem:[#allocation7] sm:$0xff]
      %v114 = vld [vmem:[#allocation7 + $0x8] sm:$0xff]
      %v115 = vld [vmem:[%s2] sm:$0x1]
      %v117 = vlaneseq
      %v118 = vshrl.u32 %v117, 7
      %v119 = vsub.s32 0, %v118
      %v120 = vrot.slane %v115, %v119
      %v122 = vadd.f32 %v113, %v120
      %v123 = vadd.f32 %v114, %v120
      %124 = vst [vmem:[#allocation7] sm:$0xff] %v122
      %125 = vst [vmem:[#allocation7 + $0x8] sm:$0xff] %v123
    $region29: #{tpu_custom_call.1} parent=1 // pred_fallthru
      _
    // Predicated region
    $region30: #{tpu_custom_call.1} parent=1 // pred_check
      _
    $region31: #{tpu_custom_call.1} parent=1 // pred_check_branch
      %127 = sbr.rel (0) target = $region33
    $region32: #{tpu_custom_call.1} parent=1 // pred_region
      %s129 = ssub.s32 256, 256
      %130 = vsyncadd [#allocation4], %s129
      %s131 = sshll.u32 [#allocation7], 4
      %s132 = int_to_ptr.vmem [resolvable:$true] %s131
      %137 = dma.vmem_to_hbm [thread:$0]  %s132, 256, %s3, [#allocation4], 128, 128, 8
    $region33: #{tpu_custom_call.1} parent=1 // pred_fallthru
      _
    // Predicated region
    $region34: #{tpu_custom_call.1} parent=1 // pred_check
      _
    $region35: #{tpu_custom_call.1} parent=1 // pred_check_branch
      %139 = sbr.rel (0) target = $region37
    $region36: #{tpu_custom_call.1} parent=1 // pred_region
      %140 = dma.done [#allocation4], 256
    $region37: #{tpu_custom_call.1} parent=1 // pred_fallthru
      _
    %141 = vsyncpa [#allocation3], 1
    %142 = vsyncpa [#allocation6], 1
    %143 = vsyncpa [#allocation4], 1

</llo_original>
